<compile_context>
chip_gen: v7x
topology: tpu7x:2x2x1
jax: 0.10.0
libtpu: 0.0.40
codegen_flags: <defaults>
</compile_context>

<pallas_src>
import math

import jax
import jax.numpy as jnp
from jax.experimental import pallas as pl
from jax.experimental.pallas import tpu as pltpu


def _mrnn_seq_kernel(h0_ref, im_ref, wi_ref, outd_ref,
                     whm_ref, bhm_ref, whh_ref, bhh_ref, woh_ref,
                     hidden_out_ref, output_out_ref,
                     h_scratch):
    """One grid step == one timestep. Hidden state carried in VMEM scratch."""
    t = pl.program_id(0)

    @pl.when(t == 0)
    def _():
        h_scratch[...] = h0_ref[...]

    h = h_scratch[...]                                            # (B, H)

    # h-dependent work only (data-side projections were hoisted out).
    hm = jnp.dot(h, whm_ref[...],
                 preferred_element_type=jnp.float32) + bhm_ref[...]   # w_hm(h)
    mx = im_ref[0] * hm                                               # w_im(x)*w_hm(h)
    wh = jnp.dot(mx, whh_ref[...],
                 preferred_element_type=jnp.float32) + bhh_ref[...]   # Whh(mx)
    hidden = jnp.tanh(wi_ref[0] + wh)                                 # tanh(Wih(x)+Whh(mx))

    # output = h2o([x, h]) = h2o_data(x) + b_h2o  (precomputed, in outd_ref)
    #                        + h @ W_h2o_hidden.T  (no bias here -> counted once)
    out_h = jnp.dot(h, woh_ref[...], preferred_element_type=jnp.float32)
    output = outd_ref[0] + out_h

    h_scratch[...] = hidden            # carry to next step
    hidden_out_ref[0] = hidden         # direct full-block stores, two outputs
    output_out_ref[0] = output


def pack_mrnn_params(params):
    """One-time packing of PyTorch-layout params into kernel-ready matrices."""
    E = params["W_im"].shape[1]
    H = params["W_hh"].shape[0]
    O = params["W_h2o"].shape[0]

    # Data-side packed projection, used once per sequence in a dense GEMM:
    #   [ w_im(x) | Wih(x) | h2o_data(x) + b_h2o ]
    Wx = jnp.concatenate([params["W_im"].T,              # (E, H)
                          params["W_ih"].T,              # (E, H)
                          params["W_h2o"][:, :E].T],     # (E, O)
                         axis=1)                         # (E, 2H+O)
    bx = jnp.concatenate([params["b_im"],
                          params["b_ih"],
                          params["b_h2o"]])              # (2H+O,)
    assert Wx.shape == (E, 2 * H + O) and bx.shape == (2 * H + O,)

    return {
        "Wx": Wx, "bx": bx,
        # Hidden-side weights: resident in VMEM across the whole sequence.
        "Whm": params["W_hm"].T,                    # (H, H)
        "bhm": params["b_hm"].reshape(1, H),
        "Whh": params["W_hh"].T,                    # (H, H)
        "bhh": params["b_hh"].reshape(1, H),
        "Woh": params["W_h2o"][:, E:].T,            # (H, O), bias already on Wx side
    }


@jax.jit
def mrnn_forward_seq(data_seq, h0, packed):
    """data_seq: (T, B, E), h0: (B, H) -> (output_seq (T,B,O), hidden_seq (T,B,H))."""
    T, B, E = data_seq.shape
    H = packed["Whh"].shape[0]
    O = packed["Woh"].shape[1]

    # Hoisted, non-recurrent projection: one dense GEMM over the whole sequence.
    xw = jnp.dot(data_seq.reshape(T * B, E), packed["Wx"],
                 preferred_element_type=jnp.float32) + packed["bx"]
    xw = xw.reshape(T, B, 2 * H + O)
    im_seq = xw[..., :H]            # w_im(x_t) + b_im
    wi_seq = xw[..., H:2 * H]       # Wih(x_t) + b_ih
    outd_seq = xw[..., 2 * H:]      # h2o_data(x_t) + b_h2o

    resident2d = lambda r, c: pl.BlockSpec((r, c), lambda t: (0, 0))
    streamed = lambda c: pl.BlockSpec((1, B, c), lambda t: (t, 0, 0))

    grid_spec = pltpu.PrefetchScalarGridSpec(
        num_scalar_prefetch=0,
        grid=(T,),
        in_specs=[
            resident2d(B, H),        # h0 (read only at t == 0)
            streamed(H),             # im_t
            streamed(H),             # wi_t
            streamed(O),             # outd_t
            resident2d(H, H),        # Whm
            resident2d(1, H),        # bhm
            resident2d(H, H),        # Whh
            resident2d(1, H),        # bhh
            resident2d(H, O),        # Woh
        ],
        out_specs=[
            pl.BlockSpec((1, B, H), lambda t: (t, 0, 0)),   # hidden_seq
            pl.BlockSpec((1, B, O), lambda t: (t, 0, 0)),   # output_seq
        ],
        scratch_shapes=[pltpu.VMEM((B, H), jnp.float32)],   # carried hidden state
    )

    hidden_seq, output_seq = pl.pallas_call(
        _mrnn_seq_kernel,
        out_shape=(jax.ShapeDtypeStruct((T, B, H), jnp.float32),
                   jax.ShapeDtypeStruct((T, B, O), jnp.float32)),
        grid_spec=grid_spec,
        compiler_params=pltpu.CompilerParams(
            dimension_semantics=("arbitrary",)),   # recurrent axis
    )(h0, im_seq, wi_seq, outd_seq,
      packed["Whm"], packed["bhm"], packed["Whh"], packed["bhh"], packed["Woh"])

    return output_seq, hidden_seq


@jax.jit
def mrnn_cell_forward(data, last_hidden, packed):
    """Single-step API matching the PyTorch module: (B,E),(B,H) -> ((B,O),(B,H))."""
    output_seq, hidden_seq = mrnn_forward_seq(data[None], last_hidden, packed)
    return output_seq[0], hidden_seq[0]


def init_linear(key, out_features, in_features):
    """Deterministic init matching nn.Linear's uniform(-1/sqrt(fan_in), +...)."""
    kw, kb = jax.random.split(key)
    bound = 1.0 / math.sqrt(in_features)
    W = jax.random.uniform(kw, (out_features, in_features), jnp.float32, -bound, bound)
    b = jax.random.uniform(kb, (out_features,), jnp.float32, -bound, bound)
    return W, b


def reference_forward(data, last_hidden, params):
    """Pure-JAX reference mirroring the PyTorch module exactly."""
    def lin(x, W, b):
        return x @ W.T + b
    inp = jnp.concatenate([data, last_hidden], axis=1)
    mx = lin(data, params["W_im"], params["b_im"]) * lin(last_hidden, params["W_hm"], params["b_hm"])
    wi = lin(data, params["W_ih"], params["b_ih"])
    wh = lin(mx, params["W_hh"], params["b_hh"])
    hidden = jnp.tanh(wi + wh)
    output = lin(inp, params["W_h2o"], params["b_h2o"])
    return output, hidden


if __name__ == "__main__":
    T, B, E, H, O = 12, 8, 16, 32, 8   # seq, batch, embed, hidden, output
    key = jax.random.PRNGKey(0)
    k_data, k_hid, k1, k2, k3, k4, k5 = jax.random.split(key, 7)

    data_seq = jax.random.normal(k_data, (T, B, E), jnp.float32)
    h0 = jax.random.normal(k_hid, (B, H), jnp.float32)

    W_ih, b_ih = init_linear(k1, H, E)           # Wih: embed -> hidden
    W_hh, b_hh = init_linear(k2, H, H)           # Whh: hidden -> hidden
    W_h2o, b_h2o = init_linear(k3, O, E + H)     # h2o: (embed+hidden) -> output
    W_im, b_im = init_linear(k4, H, E)           # w_im: embed -> hidden
    W_hm, b_hm = init_linear(k5, H, H)           # w_hm: hidden -> hidden

    params = dict(W_ih=W_ih, b_ih=b_ih, W_hh=W_hh, b_hh=b_hh,
                  W_h2o=W_h2o, b_h2o=b_h2o,
                  W_im=W_im, b_im=b_im, W_hm=W_hm, b_hm=b_hm)

    # One-time weight packing (hoisted out of the per-step / per-sequence path).
    packed = jax.tree_util.tree_map(jax.block_until_ready, pack_mrnn_params(params))

    # --- Fused sequence forward (one pallas_call for all T steps) ------------
    out_seq, hid_seq = mrnn_forward_seq(data_seq, h0, packed)
    jax.block_until_ready((out_seq, hid_seq))

    # Reference: step the pure-JAX cell over the sequence.
    h = h0
    ref_outs, ref_hids = [], []
    for t in range(T):
        o, h = reference_forward(data_seq[t], h, params)
        ref_outs.append(o)
        ref_hids.append(h)
    ref_out_seq = jnp.stack(ref_outs)
    ref_hid_seq = jnp.stack(ref_hids)

    assert jnp.allclose(out_seq, ref_out_seq, atol=1e-5, rtol=1e-5), "seq output mismatch"
    assert jnp.allclose(hid_seq, ref_hid_seq, atol=1e-5, rtol=1e-5), "seq hidden mismatch"

    # --- Single-step cell API (matches the PyTorch module's forward) ---------
    out1, hid1 = mrnn_cell_forward(data_seq[0], h0, packed)
    jax.block_until_ready((out1, hid1))
    ref_out1, ref_hid1 = reference_forward(data_seq[0], h0, params)
    assert jnp.allclose(out1, ref_out1, atol=1e-5, rtol=1e-5), "cell output mismatch"
    assert jnp.allclose(hid1, ref_hid1, atol=1e-5, rtol=1e-5), "cell hidden mismatch"

    print("KERNEL_OK")
</pallas_src>

<mosaic_0001>
module attributes {stable_mosaic.version = 11 : i64} {
  func.func @_mrnn_seq_kernel(%arg0: i32, %arg1: memref<8x32xf32, #tpu.memory_space<vmem>>, %arg2: memref<1x8x32xf32, #tpu.memory_space<vmem>>, %arg3: memref<1x8x32xf32, #tpu.memory_space<vmem>>, %arg4: memref<1x8x8xf32, #tpu.memory_space<vmem>>, %arg5: memref<32x32xf32, #tpu.memory_space<vmem>>, %arg6: memref<1x32xf32, #tpu.memory_space<vmem>>, %arg7: memref<32x32xf32, #tpu.memory_space<vmem>>, %arg8: memref<1x32xf32, #tpu.memory_space<vmem>>, %arg9: memref<32x8xf32, #tpu.memory_space<vmem>>, %arg10: memref<1x8x32xf32, #tpu.memory_space<vmem>>, %arg11: memref<1x8x8xf32, #tpu.memory_space<vmem>>, %arg12: memref<8x32xf32, #tpu.memory_space<vmem>>) attributes {dimension_semantics = [#tpu.dimension_semantics<arbitrary>], iteration_bounds = array<i64: 12>, scalar_prefetch = 0 : i64, scratch_operands = 1 : i64, tpu.core_type = #tpu.core_type<tc>, window_params = [{pipeline_mode = #tpu.pipeline_mode<synchronous>, transform_indices = @transform_0, window_bounds = array<i64: 8, 32>}, {transform_indices = @transform_1, window_bounds = array<i64: 1, 8, 32>}, {transform_indices = @transform_2, window_bounds = array<i64: 1, 8, 32>}, {transform_indices = @transform_3, window_bounds = array<i64: 1, 8, 8>}, {pipeline_mode = #tpu.pipeline_mode<synchronous>, transform_indices = @transform_4, window_bounds = array<i64: 32, 32>}, {pipeline_mode = #tpu.pipeline_mode<synchronous>, transform_indices = @transform_5, window_bounds = array<i64: 1, 32>}, {pipeline_mode = #tpu.pipeline_mode<synchronous>, transform_indices = @transform_6, window_bounds = array<i64: 32, 32>}, {pipeline_mode = #tpu.pipeline_mode<synchronous>, transform_indices = @transform_7, window_bounds = array<i64: 1, 32>}, {pipeline_mode = #tpu.pipeline_mode<synchronous>, transform_indices = @transform_8, window_bounds = array<i64: 32, 8>}, {transform_indices = @transform_9, window_bounds = array<i64: 1, 8, 32>}, {transform_indices = @transform_10, window_bounds = array<i64: 1, 8, 8>}]} {
    %c0_i32 = arith.constant 0 : i32
    %0 = arith.cmpi eq, %arg0, %c0_i32 : i32
    %1 = arith.extui %0 : i1 to i32
    %c0_i32_0 = arith.constant 0 : i32
    %2 = arith.cmpi ne, %1, %c0_i32_0 : i32
    scf.if %2 {
      %c0_31 = arith.constant 0 : index
      %c0_32 = arith.constant 0 : index
      %33 = vector.load %arg1[%c0_31, %c0_32] : memref<8x32xf32, #tpu.memory_space<vmem>>, vector<8x32xf32>
      %c0_33 = arith.constant 0 : index
      %c0_34 = arith.constant 0 : index
      %34 = vector.load %arg12[%c0_33, %c0_34] : memref<8x32xf32, #tpu.memory_space<vmem>>, vector<8x32xf32>
      tpu.vector_store %arg12[%c0_33, %c0_34], %33 {strides = array<i32>} : memref<8x32xf32, #tpu.memory_space<vmem>>, vector<8x32xf32>,
    } else {
    }
    %c0 = arith.constant 0 : index
    %c0_1 = arith.constant 0 : index
    %3 = vector.load %arg12[%c0, %c0_1] : memref<8x32xf32, #tpu.memory_space<vmem>>, vector<8x32xf32>
    %c0_2 = arith.constant 0 : index
    %c0_3 = arith.constant 0 : index
    %4 = vector.load %arg5[%c0_2, %c0_3] : memref<32x32xf32, #tpu.memory_space<vmem>>, vector<32x32xf32>
    %cst = arith.constant dense<0.000000e+00> : vector<8x32xf32>
    %5 = tpu.matmul %3, %4, %cst {dimension_numbers = #tpu.dot_dimension_numbers<[1], [0], [0], [1], [0, 0, 1, 1], [], []>} : vector<8x32xf32>, vector<32x32xf32>, vector<8x32xf32> -> vector<8x32xf32>
    %c0_4 = arith.constant 0 : index
    %c0_5 = arith.constant 0 : index
    %6 = vector.load %arg6[%c0_4, %c0_5] : memref<1x32xf32, #tpu.memory_space<vmem>>, vector<1x32xf32>
    %7 = vector.broadcast %6 : vector<1x32xf32> to vector<8x32xf32>
    %8 = arith.addf %5, %7 : vector<8x32xf32>
    %c0_6 = arith.constant 0 : index
    %c0_7 = arith.constant 0 : index
    %c0_8 = arith.constant 0 : index
    %9 = vector.load %arg2[%c0_6, %c0_7, %c0_8] : memref<1x8x32xf32, #tpu.memory_space<vmem>>, vector<1x8x32xf32>
    %10 = vector.shape_cast %9 : vector<1x8x32xf32> to vector<8x32xf32>
    %11 = arith.mulf %10, %8 : vector<8x32xf32>
    %c0_9 = arith.constant 0 : index
    %c0_10 = arith.constant 0 : index
    %12 = vector.load %arg7[%c0_9, %c0_10] : memref<32x32xf32, #tpu.memory_space<vmem>>, vector<32x32xf32>
    %cst_11 = arith.constant dense<0.000000e+00> : vector<8x32xf32>
    %13 = tpu.matmul %11, %12, %cst_11 {dimension_numbers = #tpu.dot_dimension_numbers<[1], [0], [0], [1], [0, 0, 1, 1], [], []>} : vector<8x32xf32>, vector<32x32xf32>, vector<8x32xf32> -> vector<8x32xf32>
    %c0_12 = arith.constant 0 : index
    %c0_13 = arith.constant 0 : index
    %14 = vector.load %arg8[%c0_12, %c0_13] : memref<1x32xf32, #tpu.memory_space<vmem>>, vector<1x32xf32>
    %15 = vector.broadcast %14 : vector<1x32xf32> to vector<8x32xf32>
    %16 = arith.addf %13, %15 : vector<8x32xf32>
    %c0_14 = arith.constant 0 : index
    %c0_15 = arith.constant 0 : index
    %c0_16 = arith.constant 0 : index
    %17 = vector.load %arg3[%c0_14, %c0_15, %c0_16] : memref<1x8x32xf32, #tpu.memory_space<vmem>>, vector<1x8x32xf32>
    %18 = vector.shape_cast %17 : vector<1x8x32xf32> to vector<8x32xf32>
    %19 = arith.addf %18, %16 : vector<8x32xf32>
    %20 = math.tanh %19 : vector<8x32xf32>
    %c0_17 = arith.constant 0 : index
    %c0_18 = arith.constant 0 : index
    %21 = vector.load %arg9[%c0_17, %c0_18] : memref<32x8xf32, #tpu.memory_space<vmem>>, vector<32x8xf32>
    %cst_19 = arith.constant dense<0.000000e+00> : vector<8x8xf32>
    %22 = tpu.matmul %3, %21, %cst_19 {dimension_numbers = #tpu.dot_dimension_numbers<[1], [0], [0], [1], [0, 0, 1, 1], [], []>} : vector<8x32xf32>, vector<32x8xf32>, vector<8x8xf32> -> vector<8x8xf32>
    %c0_20 = arith.constant 0 : index
    %c0_21 = arith.constant 0 : index
    %c0_22 = arith.constant 0 : index
    %23 = vector.load %arg4[%c0_20, %c0_21, %c0_22] : memref<1x8x8xf32, #tpu.memory_space<vmem>>, vector<1x8x8xf32>
    %24 = vector.shape_cast %23 : vector<1x8x8xf32> to vector<8x8xf32>
    %25 = arith.addf %24, %22 : vector<8x8xf32>
    %c0_23 = arith.constant 0 : index
    %c0_24 = arith.constant 0 : index
    %26 = vector.load %arg12[%c0_23, %c0_24] : memref<8x32xf32, #tpu.memory_space<vmem>>, vector<8x32xf32>
    tpu.vector_store %arg12[%c0_23, %c0_24], %20 {strides = array<i32>} : memref<8x32xf32, #tpu.memory_space<vmem>>, vector<8x32xf32>,
    %c0_25 = arith.constant 0 : index
    %c0_26 = arith.constant 0 : index
    %c0_27 = arith.constant 0 : index
    %27 = vector.load %arg10[%c0_25, %c0_26, %c0_27] : memref<1x8x32xf32, #tpu.memory_space<vmem>>, vector<1x8x32xf32>
    %28 = vector.shape_cast %27 : vector<1x8x32xf32> to vector<8x32xf32>
    %29 = vector.shape_cast %20 : vector<8x32xf32> to vector<1x8x32xf32>
    tpu.vector_store %arg10[%c0_25, %c0_26, %c0_27], %29 {strides = array<i32>} : memref<1x8x32xf32, #tpu.memory_space<vmem>>, vector<1x8x32xf32>,
    %c0_28 = arith.constant 0 : index
    %c0_29 = arith.constant 0 : index
    %c0_30 = arith.constant 0 : index
    %30 = vector.load %arg11[%c0_28, %c0_29, %c0_30] : memref<1x8x8xf32, #tpu.memory_space<vmem>>, vector<1x8x8xf32>
    %31 = vector.shape_cast %30 : vector<1x8x8xf32> to vector<8x8xf32>
    %32 = vector.shape_cast %25 : vector<8x8xf32> to vector<1x8x8xf32>
    tpu.vector_store %arg11[%c0_28, %c0_29, %c0_30], %32 {strides = array<i32>} : memref<1x8x8xf32, #tpu.memory_space<vmem>>, vector<1x8x8xf32>,
    return
  }
  func.func @transform_0(%arg0: i32) -> (i32, i32) {
    %c0_i32 = arith.constant 0 : i32
    %c0_i32_0 = arith.constant 0 : i32
    %c0_i32_1 = arith.constant 0 : i32
    return %c0_i32, %c0_i32_0 : i32, i32
  }
  func.func @transform_1(%arg0: i32) -> (i32, i32, i32) {
    %c0_i32 = arith.constant 0 : i32
    %c0_i32_0 = arith.constant 0 : i32
    %c0_i32_1 = arith.constant 0 : i32
    return %arg0, %c0_i32, %c0_i32_0 : i32, i32, i32
  }
  func.func @transform_2(%arg0: i32) -> (i32, i32, i32) {
    %c0_i32 = arith.constant 0 : i32
    %c0_i32_0 = arith.constant 0 : i32
    %c0_i32_1 = arith.constant 0 : i32
    return %arg0, %c0_i32, %c0_i32_0 : i32, i32, i32
  }
  func.func @transform_3(%arg0: i32) -> (i32, i32, i32) {
    %c0_i32 = arith.constant 0 : i32
    %c0_i32_0 = arith.constant 0 : i32
    %c0_i32_1 = arith.constant 0 : i32
    return %arg0, %c0_i32, %c0_i32_0 : i32, i32, i32
  }
  func.func @transform_4(%arg0: i32) -> (i32, i32) {
    %c0_i32 = arith.constant 0 : i32
    %c0_i32_0 = arith.constant 0 : i32
    %c0_i32_1 = arith.constant 0 : i32
    return %c0_i32, %c0_i32_0 : i32, i32
  }
  func.func @transform_5(%arg0: i32) -> (i32, i32) {
    %c0_i32 = arith.constant 0 : i32
    %c0_i32_0 = arith.constant 0 : i32
    %c0_i32_1 = arith.constant 0 : i32
    return %c0_i32, %c0_i32_0 : i32, i32
  }
  func.func @transform_6(%arg0: i32) -> (i32, i32) {
    %c0_i32 = arith.constant 0 : i32
    %c0_i32_0 = arith.constant 0 : i32
    %c0_i32_1 = arith.constant 0 : i32
    return %c0_i32, %c0_i32_0 : i32, i32
  }
  func.func @transform_7(%arg0: i32) -> (i32, i32) {
    %c0_i32 = arith.constant 0 : i32
    %c0_i32_0 = arith.constant 0 : i32
    %c0_i32_1 = arith.constant 0 : i32
    return %c0_i32, %c0_i32_0 : i32, i32
  }
  func.func @transform_8(%arg0: i32) -> (i32, i32) {
    %c0_i32 = arith.constant 0 : i32
    %c0_i32_0 = arith.constant 0 : i32
    %c0_i32_1 = arith.constant 0 : i32
    return %c0_i32, %c0_i32_0 : i32, i32
  }
  func.func @transform_9(%arg0: i32) -> (i32, i32, i32) {
    %c0_i32 = arith.constant 0 : i32
    %c0_i32_0 = arith.constant 0 : i32
    %c0_i32_1 = arith.constant 0 : i32
    return %arg0, %c0_i32, %c0_i32_0 : i32, i32, i32
  }
  func.func @transform_10(%arg0: i32) -> (i32, i32, i32) {
    %c0_i32 = arith.constant 0 : i32
    %c0_i32_0 = arith.constant 0 : i32
    %c0_i32_1 = arith.constant 0 : i32
    return %arg0, %c0_i32, %c0_i32_0 : i32, i32, i32
  }
}

</mosaic_0001>

<llo_original>
// kernel: mrnn_forward_seq.1
$region0: #{mrnn_forward_seq.1}
  #allocation0 [shape = 'u32[]', space=smem, size = 0x4, offset = 0x4, fixed_abs, tag = 'smem constant byte address 0x4 - core index']
  #allocation1 [shape = 'u32[144,128]{1,0:T(1,128)}', space=vmem, size = 0x12000, scoped, tag = 'internal scratch']
  #allocation2 [shape = 'f32[8,32]{1,0:T(8,128)}', space=vmem, size = 0x1000, scoped, tag = 'scratch operand']
  %s0 = inlined_call_operand.vmem [shape: f32[8,32], index: 0, kind: input, shape index: {}]
  %s1 = inlined_call_operand.vmem [shape: f32[12,8,32], index: 1, kind: input, shape index: {}]
  %s2 = inlined_call_operand.vmem [shape: f32[12,8,32], index: 2, kind: input, shape index: {}]
  %s3 = inlined_call_operand.vmem [shape: f32[12,8,8], index: 3, kind: input, shape index: {}]
  %s4 = inlined_call_operand.vmem [shape: f32[32,32], index: 4, kind: input, shape index: {}]
  %s5 = inlined_call_operand.vmem [shape: f32[1,32], index: 5, kind: input, shape index: {}]
  %s6 = inlined_call_operand.vmem [shape: f32[32,32], index: 6, kind: input, shape index: {}]
  %s7 = inlined_call_operand.vmem [shape: f32[1,32], index: 7, kind: input, shape index: {}]
  %s8 = inlined_call_operand.vmem [shape: f32[32,8], index: 8, kind: input, shape index: {}]
  %s9 = inlined_call_operand.hbm [shape: f32[12,8,32], index: 9, kind: output, shape index: {0}]
  %s10 = inlined_call_operand.vmem [shape: f32[12,8,8], index: 10, kind: output, shape index: {1}]
  %11 = xla_tuple %s9, %s10
  %s12 = sld [smem:[#allocation0]]
  $region81: #{mrnn_forward_seq.1} parent=0
    _
  %s14 = ssub.s32 1, %s12
  %s15 = scalar_select 0, %s14, %s12
  $region1: #{mrnn_forward_seq.1} parent=0
    #allocation3 [shape = 'u8[8192]{0}', space=vmem, size = 0x2000, scoped, tag = 'output window, operand 0']
    #allocation4 [shape = 's32[2]{0}', space=sflag, size = 0x8, scoped, tag = 'scoped memory for mrnn_forward_seq.1']
    %16 = vsyncpa [#allocation4], 0
    %s17 = scalar_lea.sflag [#allocation4], 1
    %18 = vsyncpa %s17, 0
    loop: start=0, step=1, limit=14
    $region2: #{mrnn_forward_seq.1} parent=1 // loop_pre_header
      _
    $region3: #{mrnn_forward_seq.1} parent=1 // loop_header
      %s20 = sphi 0, %s24
      %p21 = scmp.ge.s32.totalorder %s20, 14
      %s28 = sphi 0, %s28
      %s30 = sphi 0, %s28
      %s31 = sphi 0, %s30
      %s45 = sphi 0, %s31
      %s51 = sphi 0, %s53
      %s54 = sphi 0, %s51
      %s55 = sphi 0, %s54
      %s71 = sphi 0, %s55
      %s77 = sphi 0, %s79
      %s80 = sphi 0, %s77
      %s81 = sphi 0, %s80
      %s97 = sphi 0, %s81
      %s103 = sphi 0, %s105
      %s106 = sphi 0, %s103
      %s107 = sphi 0, %s106
      %s123 = sphi 0, %s107
      %s127 = sphi 0, %s127
      %s129 = sphi 0, %s127
      %s130 = sphi 0, %s129
      %s144 = sphi 0, %s130
      %s148 = sphi 0, %s148
      %s150 = sphi 0, %s148
      %s151 = sphi 0, %s150
      %s165 = sphi 0, %s151
      %s169 = sphi 0, %s169
      %s171 = sphi 0, %s169
      %s172 = sphi 0, %s171
      %s186 = sphi 0, %s172
      %s190 = sphi 0, %s190
      %s192 = sphi 0, %s190
      %s193 = sphi 0, %s192
      %s207 = sphi 0, %s193
      %s211 = sphi 0, %s211
      %s213 = sphi 0, %s211
      %s214 = sphi 0, %s213
      %s228 = sphi 0, %s214
      %s234 = sphi 0, %s236
      %s237 = sphi 0, %s234
      %s238 = sphi 0, %s237
      %s254 = sphi 0, %s238
      %s260 = sphi 0, %s262
      %s263 = sphi 0, %s260
      %s264 = sphi 0, %s263
      %s280 = sphi 0, %s264
    $region4: #{mrnn_forward_seq.1} parent=1 // loop_header_branch
      %23 = sbr.rel (%p21) target = $region8
    $region5: #{mrnn_forward_seq.1} parent=1 // loop_body
      %s25 = ssub.s32 %s20, 1
      %s26 = ssub.s32 %s20, 2
      %s27 = sadd.s32 %s20, 1
      %s29 = sadd.s32 %s28, 1
      %p32 = scmp.eq.s32.totalorder %s20, 11
      %p33 = scmp.ne.s32.totalorder %s28, %s30
      %p34 = scmp.eq.s32.totalorder %s20, 0
      %p35 = por %p33, %p34
      %p36 = scmp.ne.s32.totalorder %s28, %s30
      %p37 = scmp.eq.s32.totalorder %s25, 11
      %p38 = por %p36, %p37
      %p39 = scmp.ne.s32.totalorder %s30, %s31
      %p40 = scmp.eq.s32.totalorder %s25, 0
      %p41 = por %p39, %p40
      %p42 = scmp.ne.s32.totalorder %s30, %s31
      %p43 = scmp.eq.s32.totalorder %s26, 11
      %p44 = por %p42, %p43
      %p46 = scmp.ne.s32.totalorder %s31, %s45
      %p47 = scmp.eq.s32.totalorder %s26, 0
      %p48 = por %p46, %p47
      %s49 = ssub.s32 %s20, %s27
      %p50 = scmp.eq.s32.totalorder %s49, 0
      %s52 = sadd.s32 %s51, 1
      %s53 = scalar_select %p50, %s51, %s52
      %p56 = pneg %p50
      %p57 = scmp.eq.s32.totalorder %s20, 11
      %p58 = por %p56, %p57
      %p59 = scmp.ne.s32.totalorder %s51, %s54
      %p60 = scmp.eq.s32.totalorder %s20, 0
      %p61 = por %p59, %p60
      %p62 = scmp.ne.s32.totalorder %s51, %s54
      %p63 = scmp.eq.s32.totalorder %s25, 11
      %p64 = por %p62, %p63
      %p65 = scmp.ne.s32.totalorder %s54, %s55
      %p66 = scmp.eq.s32.totalorder %s25, 0
      %p67 = por %p65, %p66
      %p68 = scmp.ne.s32.totalorder %s54, %s55
      %p69 = scmp.eq.s32.totalorder %s26, 11
      %p70 = por %p68, %p69
      %p72 = scmp.ne.s32.totalorder %s55, %s71
      %p73 = scmp.eq.s32.totalorder %s26, 0
      %p74 = por %p72, %p73
      %s75 = ssub.s32 %s20, %s27
      %p76 = scmp.eq.s32.totalorder %s75, 0
      %s78 = sadd.s32 %s77, 1
      %s79 = scalar_select %p76, %s77, %s78
      %p82 = pneg %p76
      %p83 = scmp.eq.s32.totalorder %s20, 11
      %p84 = por %p82, %p83
      %p85 = scmp.ne.s32.totalorder %s77, %s80
      %p86 = scmp.eq.s32.totalorder %s20, 0
      %p87 = por %p85, %p86
      %p88 = scmp.ne.s32.totalorder %s77, %s80
      %p89 = scmp.eq.s32.totalorder %s25, 11
      %p90 = por %p88, %p89
      %p91 = scmp.ne.s32.totalorder %s80, %s81
      %p92 = scmp.eq.s32.totalorder %s25, 0
      %p93 = por %p91, %p92
      %p94 = scmp.ne.s32.totalorder %s80, %s81
      %p95 = scmp.eq.s32.totalorder %s26, 11
      %p96 = por %p94, %p95
      %p98 = scmp.ne.s32.totalorder %s81, %s97
      %p99 = scmp.eq.s32.totalorder %s26, 0
      %p100 = por %p98, %p99
      %s101 = ssub.s32 %s20, %s27
      %p102 = scmp.eq.s32.totalorder %s101, 0
      %s104 = sadd.s32 %s103, 1
      %s105 = scalar_select %p102, %s103, %s104
      %p108 = pneg %p102
      %p109 = scmp.eq.s32.totalorder %s20, 11
      %p110 = por %p108, %p109
      %p111 = scmp.ne.s32.totalorder %s103, %s106
      %p112 = scmp.eq.s32.totalorder %s20, 0
      %p113 = por %p111, %p112
      %p114 = scmp.ne.s32.totalorder %s103, %s106
      %p115 = scmp.eq.s32.totalorder %s25, 11
      %p116 = por %p114, %p115
      %p117 = scmp.ne.s32.totalorder %s106, %s107
      %p118 = scmp.eq.s32.totalorder %s25, 0
      %p119 = por %p117, %p118
      %p120 = scmp.ne.s32.totalorder %s106, %s107
      %p121 = scmp.eq.s32.totalorder %s26, 11
      %p122 = por %p120, %p121
      %p124 = scmp.ne.s32.totalorder %s107, %s123
      %p125 = scmp.eq.s32.totalorder %s26, 0
      %p126 = por %p124, %p125
      %s128 = sadd.s32 %s127, 1
      %p131 = scmp.eq.s32.totalorder %s20, 11
      %p132 = scmp.ne.s32.totalorder %s127, %s129
      %p133 = scmp.eq.s32.totalorder %s20, 0
      %p134 = por %p132, %p133
      %p135 = scmp.ne.s32.totalorder %s127, %s129
      %p136 = scmp.eq.s32.totalorder %s25, 11
      %p137 = por %p135, %p136
      %p138 = scmp.ne.s32.totalorder %s129, %s130
      %p139 = scmp.eq.s32.totalorder %s25, 0
      %p140 = por %p138, %p139
      %p141 = scmp.ne.s32.totalorder %s129, %s130
      %p142 = scmp.eq.s32.totalorder %s26, 11
      %p143 = por %p141, %p142
      %p145 = scmp.ne.s32.totalorder %s130, %s144
      %p146 = scmp.eq.s32.totalorder %s26, 0
      %p147 = por %p145, %p146
      %s149 = sadd.s32 %s148, 1
      %p152 = scmp.eq.s32.totalorder %s20, 11
      %p153 = scmp.ne.s32.totalorder %s148, %s150
      %p154 = scmp.eq.s32.totalorder %s20, 0
      %p155 = por %p153, %p154
      %p156 = scmp.ne.s32.totalorder %s148, %s150
      %p157 = scmp.eq.s32.totalorder %s25, 11
      %p158 = por %p156, %p157
      %p159 = scmp.ne.s32.totalorder %s150, %s151
      %p160 = scmp.eq.s32.totalorder %s25, 0
      %p161 = por %p159, %p160
      %p162 = scmp.ne.s32.totalorder %s150, %s151
      %p163 = scmp.eq.s32.totalorder %s26, 11
      %p164 = por %p162, %p163
      %p166 = scmp.ne.s32.totalorder %s151, %s165
      %p167 = scmp.eq.s32.totalorder %s26, 0
      %p168 = por %p166, %p167
      %s170 = sadd.s32 %s169, 1
      %p173 = scmp.eq.s32.totalorder %s20, 11
      %p174 = scmp.ne.s32.totalorder %s169, %s171
      %p175 = scmp.eq.s32.totalorder %s20, 0
      %p176 = por %p174, %p175
      %p177 = scmp.ne.s32.totalorder %s169, %s171
      %p178 = scmp.eq.s32.totalorder %s25, 11
      %p179 = por %p177, %p178
      %p180 = scmp.ne.s32.totalorder %s171, %s172
      %p181 = scmp.eq.s32.totalorder %s25, 0
      %p182 = por %p180, %p181
      %p183 = scmp.ne.s32.totalorder %s171, %s172
      %p184 = scmp.eq.s32.totalorder %s26, 11
      %p185 = por %p183, %p184
      %p187 = scmp.ne.s32.totalorder %s172, %s186
      %p188 = scmp.eq.s32.totalorder %s26, 0
      %p189 = por %p187, %p188
      %s191 = sadd.s32 %s190, 1
      %p194 = scmp.eq.s32.totalorder %s20, 11
      %p195 = scmp.ne.s32.totalorder %s190, %s192
      %p196 = scmp.eq.s32.totalorder %s20, 0
      %p197 = por %p195, %p196
      %p198 = scmp.ne.s32.totalorder %s190, %s192
      %p199 = scmp.eq.s32.totalorder %s25, 11
      %p200 = por %p198, %p199
      %p201 = scmp.ne.s32.totalorder %s192, %s193
      %p202 = scmp.eq.s32.totalorder %s25, 0
      %p203 = por %p201, %p202
      %p204 = scmp.ne.s32.totalorder %s192, %s193
      %p205 = scmp.eq.s32.totalorder %s26, 11
      %p206 = por %p204, %p205
      %p208 = scmp.ne.s32.totalorder %s193, %s207
      %p209 = scmp.eq.s32.totalorder %s26, 0
      %p210 = por %p208, %p209
      %s212 = sadd.s32 %s211, 1
      %p215 = scmp.eq.s32.totalorder %s20, 11
      %p216 = scmp.ne.s32.totalorder %s211, %s213
      %p217 = scmp.eq.s32.totalorder %s20, 0
      %p218 = por %p216, %p217
      %p219 = scmp.ne.s32.totalorder %s211, %s213
      %p220 = scmp.eq.s32.totalorder %s25, 11
      %p221 = por %p219, %p220
      %p222 = scmp.ne.s32.totalorder %s213, %s214
      %p223 = scmp.eq.s32.totalorder %s25, 0
      %p224 = por %p222, %p223
      %p225 = scmp.ne.s32.totalorder %s213, %s214
      %p226 = scmp.eq.s32.totalorder %s26, 11
      %p227 = por %p225, %p226
      %p229 = scmp.ne.s32.totalorder %s214, %s228
      %p230 = scmp.eq.s32.totalorder %s26, 0
      %p231 = por %p229, %p230
      %s232 = ssub.s32 %s20, %s27
      %p233 = scmp.eq.s32.totalorder %s232, 0
      %s235 = sadd.s32 %s234, 1
      %s236 = scalar_select %p233, %s234, %s235
      %p239 = pneg %p233
      %p240 = scmp.eq.s32.totalorder %s20, 11
      %p241 = por %p239, %p240
      %p242 = scmp.ne.s32.totalorder %s234, %s237
      %p243 = scmp.eq.s32.totalorder %s20, 0
      %p244 = por %p242, %p243
      %p245 = scmp.ne.s32.totalorder %s234, %s237
      %p246 = scmp.eq.s32.totalorder %s25, 11
      %p247 = por %p245, %p246
      %p248 = scmp.ne.s32.totalorder %s237, %s238
      %p249 = scmp.eq.s32.totalorder %s25, 0
      %p250 = por %p248, %p249
      %p251 = scmp.ne.s32.totalorder %s237, %s238
      %p252 = scmp.eq.s32.totalorder %s26, 11
      %p253 = por %p251, %p252
      %p255 = scmp.ne.s32.totalorder %s238, %s254
      %p256 = scmp.eq.s32.totalorder %s26, 0
      %p257 = por %p255, %p256
      %s258 = ssub.s32 %s20, %s27
      %p259 = scmp.eq.s32.totalorder %s258, 0
      %s261 = sadd.s32 %s260, 1
      %s262 = scalar_select %p259, %s260, %s261
      %p265 = pneg %p259
      %p266 = scmp.eq.s32.totalorder %s20, 11
      %p267 = por %p265, %p266
      %p268 = scmp.ne.s32.totalorder %s260, %s263
      %p269 = scmp.eq.s32.totalorder %s20, 0
      %p270 = por %p268, %p269
      %p271 = scmp.ne.s32.totalorder %s260, %s263
      %p272 = scmp.eq.s32.totalorder %s25, 11
      %p273 = por %p271, %p272
      %p274 = scmp.ne.s32.totalorder %s263, %s264
      %p275 = scmp.eq.s32.totalorder %s25, 0
      %p276 = por %p274, %p275
      %p277 = scmp.ne.s32.totalorder %s263, %s264
      %p278 = scmp.eq.s32.totalorder %s26, 11
      %p279 = por %p277, %p278
      %p281 = scmp.ne.s32.totalorder %s264, %s280
      %p282 = scmp.eq.s32.totalorder %s26, 0
      %p283 = por %p281, %p282
      %p284 = scmp.le.s32.totalorder 1, %s20
      %p285 = scmp.lt.s32.totalorder %s20, 13
      %p286 = pnand %p284, %p285
      %p287 = pneg %p286
      // Predicated region
      $region9: #{mrnn_forward_seq.1} parent=5 // pred_check
        _
      $region10: #{mrnn_forward_seq.1} parent=5 // pred_check_branch
        %289 = sbr.rel (%p286) target = $region12
      $region11: #{mrnn_forward_seq.1} parent=5 // pred_region
        %s290 = ssub.s32 %s20, 1
        // Predicated region
        $region13: #{mrnn_forward_seq.1} parent=11 // pred_check
          %p291 = pneg %p41
        $region14: #{mrnn_forward_seq.1} parent=11 // pred_check_branch
          %293 = sbr.rel (%p291) target = $region16
        $region15: #{mrnn_forward_seq.1} parent=11 // pred_region
          _
        $region16: #{mrnn_forward_seq.1} parent=11 // pred_fallthru
          _
        // Predicated region
        $region17: #{mrnn_forward_seq.1} parent=11 // pred_check
          %p294 = pneg %p140
        $region18: #{mrnn_forward_seq.1} parent=11 // pred_check_branch
          %296 = sbr.rel (%p294) target = $region20
        $region19: #{mrnn_forward_seq.1} parent=11 // pred_region
          _
        $region20: #{mrnn_forward_seq.1} parent=11 // pred_fallthru
          _
        // Predicated region
        $region21: #{mrnn_forward_seq.1} parent=11 // pred_check
          %p297 = pneg %p161
        $region22: #{mrnn_forward_seq.1} parent=11 // pred_check_branch
          %299 = sbr.rel (%p297) target = $region24
        $region23: #{mrnn_forward_seq.1} parent=11 // pred_region
          _
        $region24: #{mrnn_forward_seq.1} parent=11 // pred_fallthru
          _
        // Predicated region
        $region25: #{mrnn_forward_seq.1} parent=11 // pred_check
          %p300 = pneg %p182
        $region26: #{mrnn_forward_seq.1} parent=11 // pred_check_branch
          %302 = sbr.rel (%p300) target = $region28
        $region27: #{mrnn_forward_seq.1} parent=11 // pred_region
          _
        $region28: #{mrnn_forward_seq.1} parent=11 // pred_fallthru
          _
        // Predicated region
        $region29: #{mrnn_forward_seq.1} parent=11 // pred_check
          %p303 = pneg %p203
        $region30: #{mrnn_forward_seq.1} parent=11 // pred_check_branch
          %305 = sbr.rel (%p303) target = $region32
        $region31: #{mrnn_forward_seq.1} parent=11 // pred_region
          _
        $region32: #{mrnn_forward_seq.1} parent=11 // pred_fallthru
          _
        // Predicated region
        $region33: #{mrnn_forward_seq.1} parent=11 // pred_check
          %p306 = pneg %p224
        $region34: #{mrnn_forward_seq.1} parent=11 // pred_check_branch
          %308 = sbr.rel (%p306) target = $region36
        $region35: #{mrnn_forward_seq.1} parent=11 // pred_region
          _
        $region36: #{mrnn_forward_seq.1} parent=11 // pred_fallthru
          _
      $region12: #{mrnn_forward_seq.1} parent=5 // pred_fallthru
        _
      %p309 = scmp.lt.s32.totalorder %s20, 12
      // Predicated region
      $region37: #{mrnn_forward_seq.1} parent=5 // pred_check
        %p310 = pneg %p309
      $region38: #{mrnn_forward_seq.1} parent=5 // pred_check_branch
        %312 = sbr.rel (%p310) target = $region40
      $region39: #{mrnn_forward_seq.1} parent=5 // pred_region
        // Predicated region
        $region41: #{mrnn_forward_seq.1} parent=39 // pred_check
          %p313 = pneg %p61
        $region42: #{mrnn_forward_seq.1} parent=39 // pred_check_branch
          %315 = sbr.rel (%p313) target = $region44
        $region43: #{mrnn_forward_seq.1} parent=39 // pred_region
          %p316 = scmp.lt.s32.totalorder %s20, 11
          %s317 = scalar_select %p316, %s20, 11
          %s318 = smul.addr %s317, 8
          %s319 = scalar_lea.vmem %s1, %s318
        $region44: #{mrnn_forward_seq.1} parent=39 // pred_fallthru
          _
        // Predicated region
        $region45: #{mrnn_forward_seq.1} parent=39 // pred_check
          %p320 = pneg %p87
        $region46: #{mrnn_forward_seq.1} parent=39 // pred_check_branch
          %322 = sbr.rel (%p320) target = $region48
        $region47: #{mrnn_forward_seq.1} parent=39 // pred_region
          %p323 = scmp.lt.s32.totalorder %s20, 11
          %s324 = scalar_select %p323, %s20, 11
          %s325 = smul.addr %s324, 8
          %s326 = scalar_lea.vmem %s2, %s325
        $region48: #{mrnn_forward_seq.1} parent=39 // pred_fallthru
          _
        // Predicated region
        $region49: #{mrnn_forward_seq.1} parent=39 // pred_check
          %p327 = pneg %p113
        $region50: #{mrnn_forward_seq.1} parent=39 // pred_check_branch
          %329 = sbr.rel (%p327) target = $region52
        $region51: #{mrnn_forward_seq.1} parent=39 // pred_region
          %p330 = scmp.lt.s32.totalorder %s20, 11
          %s331 = scalar_select %p330, %s20, 11
          %s332 = smul.addr %s331, 8
          %s333 = scalar_lea.vmem %s3, %s332
        $region52: #{mrnn_forward_seq.1} parent=39 // pred_fallthru
          _
      $region40: #{mrnn_forward_seq.1} parent=5 // pred_fallthru
        _
      %p334 = scmp.le.s32.totalorder 1, %s20
      %p335 = scmp.lt.s32.totalorder %s20, 13
      %p336 = pnand %p334, %p335
      %p337 = pneg %p336
      // Predicated region
      $region53: #{mrnn_forward_seq.1} parent=5 // pred_check
        _
      $region54: #{mrnn_forward_seq.1} parent=5 // pred_check_branch
        %339 = sbr.rel (%p336) target = $region56
      $region55: #{mrnn_forward_seq.1} parent=5 // pred_region
        %s340 = ssub.s32 %s20, 1
        %p341 = pneg %p41
        %p342 = pneg %p38
        %p343 = scmp.lt.s32.totalorder %s25, 11
        %s344 = scalar_select %p343, %s25, 11
        %s345 = smul.addr %s344, 8
        %s346 = scalar_lea.vmem %s1, %s345
        %p347 = pneg %p67
        %p348 = pneg %p64
        %p349 = scmp.lt.s32.totalorder %s25, 11
        %s350 = scalar_select %p349, %s25, 11
        %s351 = smul.addr %s350, 8
        %s352 = scalar_lea.vmem %s2, %s351
        %p353 = pneg %p93
        %p354 = pneg %p90
        %p355 = scmp.lt.s32.totalorder %s25, 11
        %s356 = scalar_select %p355, %s25, 11
        %s357 = smul.addr %s356, 8
        %s358 = scalar_lea.vmem %s3, %s357
        %p359 = pneg %p119
        %p360 = pneg %p116
        %p361 = pneg %p140
        %p362 = pneg %p137
        %p363 = pneg %p161
        %p364 = pneg %p158
        %p365 = pneg %p182
        %p366 = pneg %p179
        %p367 = pneg %p203
        %p368 = pneg %p200
        %p369 = pneg %p224
        %p370 = pneg %p221
        %p371 = pneg %p250
        %p372 = pneg %p247
        %s373 = sand.u32 %s237, 1
        %s374 = scalar_lea.sflag [#allocation4], %s373
        %s375 = sand.u32 %s237, 1
        %s376 = smul.addr %s375, 8
        %s377 = scalar_lea.vmem [#allocation3], %s376
        %p378 = pneg %p276
        %p379 = pneg %p273
        %p380 = scmp.lt.s32.totalorder %s25, 11
        %s381 = scalar_select %p380, %s25, 11
        %s382 = smul.addr %s381, 8
        %s383 = scalar_lea.vmem %s10, %s382
        %p384 = scmp.lt.s32.totalorder %s25, 11
        %s385 = scalar_select %p384, %s25, 11
        %s386 = smul.addr %s385, 8
        %s387 = scalar_lea.vmem %s1, %s386
        %p388 = scmp.lt.s32.totalorder %s25, 11
        %s389 = scalar_select %p388, %s25, 11
        %s390 = smul.addr %s389, 8
        %s391 = scalar_lea.vmem %s2, %s390
        %p392 = scmp.lt.s32.totalorder %s25, 11
        %s393 = scalar_select %p392, %s25, 11
        %s394 = smul.addr %s393, 8
        %s395 = scalar_lea.vmem %s3, %s394
        %p396 = scmp.lt.s32.totalorder %s25, 11
        %s397 = scalar_select %p396, %s25, 11
        %s398 = smul.addr %s397, 8
        %s399 = scalar_lea.vmem %s10, %s398
        %p400 = scmp.eq.s32.totalorder %s25, 0
        // Predicated region
        $region57: #{mrnn_forward_seq.1} parent=55 // pred_check
          %p401 = pneg %p400
        $region58: #{mrnn_forward_seq.1} parent=55 // pred_check_branch
          %403 = sbr.rel (%p401) target = $region60
        $region59: #{mrnn_forward_seq.1} parent=55 // pred_region
          %v404 = vld [vmem:[%s0] sm:$0xff]
          %vm405 = vcmask 261120
          %406 = vst.msk [vmem:[#allocation2] sm:$0xff] %vm405, %v404
        $region60: #{mrnn_forward_seq.1} parent=55 // pred_fallthru
          _
        %v407 = vld [vmem:[#allocation2] sm:$0xff]
        %v408 = vld [vmem:[%s4] sm:$0xff]
        %v409 = vld [vmem:[%s4 + $0x8] sm:$0xff]
        %v410 = vld [vmem:[%s4 + $0x10] sm:$0xff]
        %v411 = vld [vmem:[%s4 + $0x18] sm:$0xff]
        %v412 = vld [vmem:[%s5] sm:$0x1]
        %v414 = vlaneseq
        %v415 = vshrl.u32 %v414, 7
        %v416 = vsub.s32 0, %v415
        %v417 = vrot.slane %v412, %v416
        %vm419 = vcmask 261120
        %v421 = vsel %vm419, %v407, 0
        %423 = vmatprep.subr.mxu0 0.0
        %424 = vmatpush1.msra.mxu0 %v408
        %425 = vmatprep.subr.mxu0 0.0
        %426 = vmatpush1.msra.mxu0 %v409
        %427 = vmatprep.subr.mxu0 0.0
        %428 = vmatpush1.msra.mxu0 %v410
        %429 = vmatprep.subr.mxu0 0.0
        %430 = vmatpush1.msra.mxu0 %v411
        %431 = vmatprep.subr.mxu0 0.0
        %432 = vmatpush1.msra.mxu0 0.0
        %433 = vmatprep.subr.mxu0 0.0
        %434 = vmatpush1.msra.mxu0 0.0
        %435 = vmatprep.subr.mxu0 0.0
        %436 = vmatpush1.msra.mxu0 0.0
        %437 = vmatprep.subr.mxu0 0.0
        %438 = vmatpush1.msra.mxu0 0.0
        %439 = vmatprep.subr.mxu0 0.0
        %440 = vmatpush1.msra.mxu0 0.0
        %441 = vmatprep.subr.mxu0 0.0
        %442 = vmatpush1.msra.mxu0 0.0
        %443 = vmatprep.subr.mxu0 0.0
        %444 = vmatpush1.msra.mxu0 0.0
        %445 = vmatprep.subr.mxu0 0.0
        %446 = vmatpush1.msra.mxu0 0.0
        %447 = vmatprep.subr.mxu0 0.0
        %448 = vmatpush1.msra.mxu0 0.0
        %449 = vmatprep.subr.mxu0 0.0
        %450 = vmatpush1.msra.mxu0 0.0
        %451 = vmatprep.subr.mxu0 0.0
        %452 = vmatpush1.msra.mxu0 0.0
        %453 = vmatprep.subr.mxu0 0.0
        %454 = vmatpush1.msra.mxu0 0.0
        %455 = vmatprep.subr.mxu0 0.0
        %456 = vmatpush1.msra.mxu0 0.0
        %457 = vmatprep.subr.mxu0 0.0
        %458 = vmatpush1.msra.mxu0 0.0
        %459 = vmatprep.subr.mxu0 0.0
        %460 = vmatpush1.msra.mxu0 0.0
        %461 = vmatprep.subr.mxu0 0.0
        %462 = vmatpush1.msra.mxu0 0.0
        %463 = vmatprep.subr.mxu0 0.0
        %464 = vmatpush1.msra.mxu0 0.0
        %465 = vmatprep.subr.mxu0 0.0
        %466 = vmatpush1.msra.mxu0 0.0
        %467 = vmatprep.subr.mxu0 0.0
        %468 = vmatpush1.msra.mxu0 0.0
        %469 = vmatprep.subr.mxu0 0.0
        %470 = vmatpush1.msra.mxu0 0.0
        %471 = vmatprep.subr.mxu0 0.0
        %472 = vmatpush1.msra.mxu0 0.0
        %473 = vmatprep.subr.mxu0 0.0
        %474 = vmatpush1.msra.mxu0 0.0
        %475 = vmatprep.subr.mxu0 0.0
        %476 = vmatpush1.msra.mxu0 0.0
        %477 = vmatprep.subr.mxu0 0.0
        %478 = vmatpush1.msra.mxu0 0.0
        %479 = vmatprep.subr.mxu0 0.0
        %480 = vmatpush1.msra.mxu0 0.0
        %481 = vmatprep.subr.mxu0 0.0
        %482 = vmatpush1.msra.mxu0 0.0
        %483 = vmatprep.subr.mxu0 0.0
        %484 = vmatpush1.msra.mxu0 0.0
        %485 = vmatprep.subr.mxu0 0.0
        %486 = vmatpush1.msra.mxu0 0.0
        %487 = vmatprep.mubr.f32.mxu0 0.0
        %488 = vmatmul.mubr.f32.gmra.mrb[0].mxu0 %v421
        %v489 = vpop.f32.mrb[0].mxu0
        %v490 = vadd.f32 %v417, %v489
        %v491 = vpop.f32.mrb[0].mxu0
        %492 = vdwg.mxu0
        %v493 = vld [vmem:[%s387] sm:$0xff]
        %v494 = vmul.f32 %v493, %v490
        %v495 = vld [vmem:[%s6] sm:$0xff]
        %v496 = vld [vmem:[%s6 + $0x8] sm:$0xff]
        %v497 = vld [vmem:[%s6 + $0x10] sm:$0xff]
        %v498 = vld [vmem:[%s6 + $0x18] sm:$0xff]
        %v499 = vld [vmem:[%s7] sm:$0x1]
        %v501 = vlaneseq
        %v502 = vshrl.u32 %v501, 7
        %v503 = vsub.s32 0, %v502
        %v504 = vrot.slane %v499, %v503
        %v507 = vsel %vm419, %v494, 0
        %509 = vmatprep.subr.mxu0 0.0
        %510 = vmatpush1.msra.mxu0 %v495
        %511 = vmatprep.subr.mxu0 0.0
        %512 = vmatpush1.msra.mxu0 %v496
        %513 = vmatprep.subr.mxu0 0.0
        %514 = vmatpush1.msra.mxu0 %v497
        %515 = vmatprep.subr.mxu0 0.0
        %516 = vmatpush1.msra.mxu0 %v498
        %517 = vmatprep.subr.mxu0 0.0
        %518 = vmatpush1.msra.mxu0 0.0
        %519 = vmatprep.subr.mxu0 0.0
        %520 = vmatpush1.msra.mxu0 0.0
        %521 = vmatprep.subr.mxu0 0.0
        %522 = vmatpush1.msra.mxu0 0.0
        %523 = vmatprep.subr.mxu0 0.0
        %524 = vmatpush1.msra.mxu0 0.0
        %525 = vmatprep.subr.mxu0 0.0
        %526 = vmatpush1.msra.mxu0 0.0
        %527 = vmatprep.subr.mxu0 0.0
        %528 = vmatpush1.msra.mxu0 0.0
        %529 = vmatprep.subr.mxu0 0.0
        %530 = vmatpush1.msra.mxu0 0.0
        %531 = vmatprep.subr.mxu0 0.0
        %532 = vmatpush1.msra.mxu0 0.0
        %533 = vmatprep.subr.mxu0 0.0
        %534 = vmatpush1.msra.mxu0 0.0
        %535 = vmatprep.subr.mxu0 0.0
        %536 = vmatpush1.msra.mxu0 0.0
        %537 = vmatprep.subr.mxu0 0.0
        %538 = vmatpush1.msra.mxu0 0.0
        %539 = vmatprep.subr.mxu0 0.0
        %540 = vmatpush1.msra.mxu0 0.0
        %541 = vmatprep.subr.mxu0 0.0
        %542 = vmatpush1.msra.mxu0 0.0
        %543 = vmatprep.subr.mxu0 0.0
        %544 = vmatpush1.msra.mxu0 0.0
        %545 = vmatprep.subr.mxu0 0.0
        %546 = vmatpush1.msra.mxu0 0.0
        %547 = vmatprep.subr.mxu0 0.0
        %548 = vmatpush1.msra.mxu0 0.0
        %549 = vmatprep.subr.mxu0 0.0
        %550 = vmatpush1.msra.mxu0 0.0
        %551 = vmatprep.subr.mxu0 0.0
        %552 = vmatpush1.msra.mxu0 0.0
        %553 = vmatprep.subr.mxu0 0.0
        %554 = vmatpush1.msra.mxu0 0.0
        %555 = vmatprep.subr.mxu0 0.0
        %556 = vmatpush1.msra.mxu0 0.0
        %557 = vmatprep.subr.mxu0 0.0
        %558 = vmatpush1.msra.mxu0 0.0
        %559 = vmatprep.subr.mxu0 0.0
        %560 = vmatpush1.msra.mxu0 0.0
        %561 = vmatprep.subr.mxu0 0.0
        %562 = vmatpush1.msra.mxu0 0.0
        %563 = vmatprep.subr.mxu0 0.0
        %564 = vmatpush1.msra.mxu0 0.0
        %565 = vmatprep.subr.mxu0 0.0
        %566 = vmatpush1.msra.mxu0 0.0
        %567 = vmatprep.subr.mxu0 0.0
        %568 = vmatpush1.msra.mxu0 0.0
        %569 = vmatprep.subr.mxu0 0.0
        %570 = vmatpush1.msra.mxu0 0.0
        %571 = vmatprep.subr.mxu0 0.0
        %572 = vmatpush1.msra.mxu0 0.0
        %573 = vmatprep.mubr.f32.mxu0 0.0
        %574 = vmatmul.mubr.f32.gmra.mrb[0].mxu0 %v507
        %v575 = vpop.f32.mrb[0].mxu0
        %v576 = vadd.f32 %v504, %v575
        %v577 = vpop.f32.mrb[0].mxu0
        %578 = vdwg.mxu0
        %v579 = vld [vmem:[%s391] sm:$0xff]
        %v580 = vadd.f32 %v579, %v576
        %v581 = vtanh.pop %v580
        %v582 = vld [vmem:[%s8] sm:$0xff]
        %v583 = vld [vmem:[%s8 + $0x8] sm:$0xff]
        %v584 = vld [vmem:[%s8 + $0x10] sm:$0xff]
        %v585 = vld [vmem:[%s8 + $0x18] sm:$0xff]
        %586 = vmatprep.subr.mxu0 0.0
        %587 = vmatpush1.msra.mxu0 %v582
        %588 = vmatprep.subr.mxu0 0.0
        %589 = vmatpush1.msra.mxu0 %v583
        %590 = vmatprep.subr.mxu0 0.0
        %591 = vmatpush1.msra.mxu0 %v584
        %592 = vmatprep.subr.mxu0 0.0
        %593 = vmatpush1.msra.mxu0 %v585
        %594 = vmatprep.subr.mxu0 0.0
        %595 = vmatpush1.msra.mxu0 0.0
        %596 = vmatprep.subr.mxu0 0.0
        %597 = vmatpush1.msra.mxu0 0.0
        %598 = vmatprep.subr.mxu0 0.0
        %599 = vmatpush1.msra.mxu0 0.0
        %600 = vmatprep.subr.mxu0 0.0
        %601 = vmatpush1.msra.mxu0 0.0
        %602 = vmatprep.subr.mxu0 0.0
        %603 = vmatpush1.msra.mxu0 0.0
        %604 = vmatprep.subr.mxu0 0.0
        %605 = vmatpush1.msra.mxu0 0.0
        %606 = vmatprep.subr.mxu0 0.0
        %607 = vmatpush1.msra.mxu0 0.0
        %608 = vmatprep.subr.mxu0 0.0
        %609 = vmatpush1.msra.mxu0 0.0
        %610 = vmatprep.subr.mxu0 0.0
        %611 = vmatpush1.msra.mxu0 0.0
        %612 = vmatprep.subr.mxu0 0.0
        %613 = vmatpush1.msra.mxu0 0.0
        %614 = vmatprep.subr.mxu0 0.0
        %615 = vmatpush1.msra.mxu0 0.0
        %616 = vmatprep.subr.mxu0 0.0
        %617 = vmatpush1.msra.mxu0 0.0
        %618 = vmatprep.subr.mxu0 0.0
        %619 = vmatpush1.msra.mxu0 0.0
        %620 = vmatprep.subr.mxu0 0.0
        %621 = vmatpush1.msra.mxu0 0.0
        %622 = vmatprep.subr.mxu0 0.0
        %623 = vmatpush1.msra.mxu0 0.0
        %624 = vmatprep.subr.mxu0 0.0
        %625 = vmatpush1.msra.mxu0 0.0
        %626 = vmatprep.subr.mxu0 0.0
        %627 = vmatpush1.msra.mxu0 0.0
        %628 = vmatprep.subr.mxu0 0.0
        %629 = vmatpush1.msra.mxu0 0.0
        %630 = vmatprep.subr.mxu0 0.0
        %631 = vmatpush1.msra.mxu0 0.0
        %632 = vmatprep.subr.mxu0 0.0
        %633 = vmatpush1.msra.mxu0 0.0
        %634 = vmatprep.subr.mxu0 0.0
        %635 = vmatpush1.msra.mxu0 0.0
        %636 = vmatprep.subr.mxu0 0.0
        %637 = vmatpush1.msra.mxu0 0.0
        %638 = vmatprep.subr.mxu0 0.0
        %639 = vmatpush1.msra.mxu0 0.0
        %640 = vmatprep.subr.mxu0 0.0
        %641 = vmatpush1.msra.mxu0 0.0
        %642 = vmatprep.subr.mxu0 0.0
        %643 = vmatpush1.msra.mxu0 0.0
        %644 = vmatprep.subr.mxu0 0.0
        %645 = vmatpush1.msra.mxu0 0.0
        %646 = vmatprep.subr.mxu0 0.0
        %647 = vmatpush1.msra.mxu0 0.0
        %648 = vmatprep.subr.mxu0 0.0
        %649 = vmatpush1.msra.mxu0 0.0
        %650 = vmatprep.mubr.f32.mxu0 0.0
        %651 = vmatmul.mubr.f32.gmra.mrb[0].mxu0 %v421
        %v652 = vpop.f32.mrb[0].mxu0
        %v653 = vadd.f32 0.0, %v652
        %v654 = vpop.f32.mrb[0].mxu0
        %655 = vdwg.mxu0
        %v656 = vld [vmem:[%s395] sm:$0xff]
        %v657 = vadd.f32 %v656, %v653
        %658 = vst.msk [vmem:[#allocation2] sm:$0xff] %vm419, %v581
        %659 = vst.msk [vmem:[%s377] sm:$0xff] %vm419, %v581
        %vm660 = vcmask 64512
        %661 = vst.msk [vmem:[%s399] sm:$0xff] %vm660, %v657
        %s662 = sand.u32 %s237, 1
        %s663 = scalar_lea.sflag [#allocation4], %s662
        %s664 = sand.u32 %s237, 1
        %s665 = smul.addr %s664, 8
        %s666 = scalar_lea.vmem [#allocation3], %s665
        %p667 = scmp.lt.s32.totalorder %s25, 11
        %s668 = scalar_select %p667, %s25, 11
        %s669 = smul.addr %s668, 8
        %s670 = scalar_lea.vmem %s10, %s669
        // Predicated region
        $region61: #{mrnn_forward_seq.1} parent=55 // pred_check
          %p671 = pneg %p247
        $region62: #{mrnn_forward_seq.1} parent=55 // pred_check_branch
          %673 = sbr.rel (%p671) target = $region64
        $region63: #{mrnn_forward_seq.1} parent=55 // pred_region
          %s675 = ssub.s32 128, 128
          %676 = vsyncadd %s663, %s675
          %s677 = smul.addr %s25, 128
          %s678 = scalar_lea.hbm %s9, %s677
          %s680 = sshll.u32 %s666, 4
          %s681 = int_to_ptr.vmem [resolvable:$true] %s680
          %683 = dma.vmem_to_hbm [thread:$0]  %s681, 128, %s678, %s663
        $region64: #{mrnn_forward_seq.1} parent=55 // pred_fallthru
          _
        // Predicated region
        $region65: #{mrnn_forward_seq.1} parent=55 // pred_check
          %p684 = pneg %p273
        $region66: #{mrnn_forward_seq.1} parent=55 // pred_check_branch
          %686 = sbr.rel (%p684) target = $region68
        $region67: #{mrnn_forward_seq.1} parent=55 // pred_region
          _
        $region68: #{mrnn_forward_seq.1} parent=55 // pred_fallthru
          _
      $region56: #{mrnn_forward_seq.1} parent=5 // pred_fallthru
        _
      %p687 = scmp.le.s32.totalorder 2, %s20
      // Predicated region
      $region69: #{mrnn_forward_seq.1} parent=5 // pred_check
        %p688 = pneg %p687
      $region70: #{mrnn_forward_seq.1} parent=5 // pred_check_branch
        %690 = sbr.rel (%p688) target = $region72
      $region71: #{mrnn_forward_seq.1} parent=5 // pred_region
        %s691 = ssub.s32 %s20, 2
        // Predicated region
        $region73: #{mrnn_forward_seq.1} parent=71 // pred_check
          %p692 = pneg %p253
        $region74: #{mrnn_forward_seq.1} parent=71 // pred_check_branch
          %694 = sbr.rel (%p692) target = $region76
        $region75: #{mrnn_forward_seq.1} parent=71 // pred_region
          %s695 = sand.u32 %s238, 1
          %s696 = scalar_lea.sflag [#allocation4], %s695
          %s697 = sand.u32 %s238, 1
          %s698 = smul.addr %s697, 8
          %s699 = scalar_lea.vmem [#allocation3], %s698
          %700 = dma.done %s696, 128
        $region76: #{mrnn_forward_seq.1} parent=71 // pred_fallthru
          _
        // Predicated region
        $region77: #{mrnn_forward_seq.1} parent=71 // pred_check
          %p701 = pneg %p279
        $region78: #{mrnn_forward_seq.1} parent=71 // pred_check_branch
          %703 = sbr.rel (%p701) target = $region80
        $region79: #{mrnn_forward_seq.1} parent=71 // pred_region
          %p704 = scmp.lt.s32.totalorder %s26, 11
          %s705 = scalar_select %p704, %s26, 11
          %s706 = smul.addr %s705, 8
          %s707 = scalar_lea.vmem %s10, %s706
        $region80: #{mrnn_forward_seq.1} parent=71 // pred_fallthru
          _
      $region72: #{mrnn_forward_seq.1} parent=5 // pred_fallthru
        _
    $region6: #{mrnn_forward_seq.1} parent=1 // loop_footer
      %s24 = sadd.s32 1, %s20
    $region7: #{mrnn_forward_seq.1} parent=1 // loop_footer_branch
      %19 = sbr.rel target = $region3
    $region8: #{mrnn_forward_seq.1} parent=1 // loop_exit
      _
    %708 = vsyncpa [#allocation4], 1
    %s709 = scalar_lea.sflag [#allocation4], 1
    %710 = vsyncpa %s709, 1

</llo_original>
